<compile_context>
chip_gen: v7x
topology: tpu7x:2x2x1
jax: 0.10.0
libtpu: 0.0.40
codegen_flags: <defaults>
</compile_context>

<pallas_src>
import functools

import jax
import jax.numpy as jnp
from jax.experimental import pallas as pl
from jax.experimental.pallas import tpu as pltpu

LEAKY_SLOPE = 0.01  # torch.nn.LeakyReLU default negative_slope


def _round_up(x, m):
    return ((x + m - 1) // m) * m


def _mlp_kernel(gflat_ref, dirs_ref, w1g_ref, w1d_ref, b1_ref,
                w2_ref, b2_ref, w3_ref, b3_ref, o_ref):
    """One batch tile of the 3-layer MLP.

    Activations are kept in float32; they are downcast to the weight dtype
    only at the MXU inputs (preferred_element_type keeps f32 accumulation).
    """
    cdt = w1g_ref.dtype

    g = gflat_ref[...].astype(cdt)
    d = dirs_ref[...].astype(cdt)

    # Layer 1: split matmul (grid part + directions part) == concat-then-matmul.
    h = (jnp.dot(g, w1g_ref[...], preferred_element_type=jnp.float32)
         + jnp.dot(d, w1d_ref[...], preferred_element_type=jnp.float32)
         + b1_ref[...])
    h = jnp.where(h > 0, h, LEAKY_SLOPE * h)

    # Layer 2: Linear + LeakyReLU.
    h = jnp.dot(h.astype(cdt), w2_ref[...],
                preferred_element_type=jnp.float32) + b2_ref[...]
    h = jnp.where(h > 0, h, LEAKY_SLOPE * h)

    # Output layer (features zero-padded to a lane-dense width).
    o_ref[...] = jnp.dot(h.astype(cdt), w3_ref[...],
                         preferred_element_type=jnp.float32) + b3_ref[...]


def agent_model_forward(grid, directions, params, *,
                        compute_dtype=jnp.bfloat16, batch_tile=512):
    """JAX wrapper mirroring AgentModel.forward.

    grid:       (B, C, H, W) float32
    directions: (B, D)       float32
    params:     dict with w1,b1,w2,b2,w3,b3 (weights stored (in, out))
    """
    B = grid.shape[0]
    gflat = grid.reshape(B, -1).astype(jnp.float32)
    dirs = directions.astype(jnp.float32)
    CHW = gflat.shape[1]
    D = dirs.shape[1]

    w1, b1 = params["w1"], params["b1"]
    w2, b2 = params["w2"], params["b2"]
    w3, b3 = params["w3"], params["b3"]
    h1, h2, out_dim = w1.shape[1], w2.shape[1], w3.shape[1]

    # Split layer-1 weights (replaces the host-side concat) and cast weights.
    w1g = w1[:CHW].astype(compute_dtype)
    w1d = w1[CHW:].astype(compute_dtype)
    w2c = w2.astype(compute_dtype)

    # Pad output features to a full 128-lane group -> unmasked, lane-dense stores.
    out_pad = _round_up(max(out_dim, 128), 128)
    w3p = jnp.zeros((h2, out_pad), compute_dtype).at[:, :out_dim].set(
        w3.astype(compute_dtype))
    b3p = jnp.zeros((1, out_pad), jnp.float32).at[:, :out_dim].set(
        b3.astype(jnp.float32))
    b1f = b1.astype(jnp.float32)
    b2f = b2.astype(jnp.float32)

    # Batch tiling: TB multiple of 8, capped at batch_tile; pad B to a multiple.
    TB = min(batch_tile, _round_up(B, 8))
    B_pad = _round_up(B, TB)
    if B_pad != B:
        gflat = jnp.pad(gflat, ((0, B_pad - B), (0, 0)))
        dirs = jnp.pad(dirs, ((0, B_pad - B), (0, 0)))

    n_tiles = pl.cdiv(B_pad, TB)

    batch_map = lambda i: (i, 0)   # x / out: walk the batch axis
    const_map = lambda i: (0, 0)   # weights / biases: resident in VMEM

    out = pl.pallas_call(
        _mlp_kernel,
        out_shape=jax.ShapeDtypeStruct((B_pad, out_pad), jnp.float32),
        grid=(n_tiles,),
        in_specs=[
            pl.BlockSpec((TB, CHW), batch_map),      # grid_flat tile
            pl.BlockSpec((TB, D), batch_map),        # directions tile
            pl.BlockSpec((CHW, h1), const_map),      # w1 (grid part)
            pl.BlockSpec((D, h1), const_map),        # w1 (directions part)
            pl.BlockSpec((1, h1), const_map),        # b1
            pl.BlockSpec((h1, h2), const_map),       # w2
            pl.BlockSpec((1, h2), const_map),        # b2
            pl.BlockSpec((h2, out_pad), const_map),  # w3 (lane-padded)
            pl.BlockSpec((1, out_pad), const_map),   # b3 (lane-padded)
        ],
        out_specs=pl.BlockSpec((TB, out_pad), batch_map),
        compiler_params=pltpu.CompilerParams(
            dimension_semantics=("parallel",),
            vmem_limit_bytes=32 * 1024 * 1024,
        ),
    )(gflat, dirs, w1g, w1d, b1f, w2c, b2f, w3p, b3p)

    return out[:B, :out_dim]


def init_params(key, sizes, output_size):
    """Deterministic init matching AgentModel(sizes, output_size).

    Weights stored transposed, (in_features, out_features); biases (1, out).
    """
    dims = list(sizes) + [output_size]
    params = {}
    for i in range(len(dims) - 1):
        fan_in, fan_out = dims[i], dims[i + 1]
        key, kw, kb = jax.random.split(key, 3)
        bound = 1.0 / jnp.sqrt(fan_in)
        params[f"w{i + 1}"] = jax.random.uniform(
            kw, (fan_in, fan_out), jnp.float32, -bound, bound)
        params[f"b{i + 1}"] = jax.random.uniform(
            kb, (1, fan_out), jnp.float32, -bound, bound)
    return params


def reference_forward(grid, directions, params, compute_dtype=jnp.float32):
    """Pure-JAX reference; mirrors the kernel's optional bf16 dot inputs."""
    B = grid.shape[0]
    x = jnp.concatenate([grid.reshape(B, -1), directions], axis=1)

    def dense(x, w, b):
        return jnp.dot(x.astype(compute_dtype), w.astype(compute_dtype),
                       preferred_element_type=jnp.float32) + b.astype(jnp.float32)

    h = dense(x, params["w1"], params["b1"])
    h = jnp.where(h > 0, h, LEAKY_SLOPE * h)
    h = dense(h, params["w2"], params["b2"])
    h = jnp.where(h > 0, h, LEAKY_SLOPE * h)
    return dense(h, params["w3"], params["b3"])


if __name__ == "__main__":
    # Shapes consistent with the module:
    #   grid (B=2, C=1, H=8, W=8) -> 64 flattened features
    #   directions (B=2, D=4)     -> 68 input features
    #   sizes = [68, 32, 32], output_size = 4
    B, C, H, W = 2, 1, 8, 8
    D_DIR = 4
    sizes = [C * H * W + D_DIR, 32, 32]
    output_size = 4

    key = jax.random.PRNGKey(0)
    key, kg, kd = jax.random.split(key, 3)
    grid_in = jax.random.normal(kg, (B, C, H, W), jnp.float32)
    directions = jax.random.normal(kd, (B, D_DIR), jnp.float32)
    params = init_params(key, sizes, output_size)

    # 1) Strict check in full f32 (exact match with the PyTorch-style math).
    out_f32 = jax.block_until_ready(
        agent_model_forward(grid_in, directions, params,
                            compute_dtype=jnp.float32))
    ref_f32 = reference_forward(grid_in, directions, params, jnp.float32)
    assert out_f32.shape == (B, output_size), out_f32.shape
    assert jnp.allclose(out_f32, ref_f32, atol=1e-5, rtol=1e-5), "f32 mismatch"

    # 2) Default bf16-weight path vs bf16-mirrored reference.
    out_bf16 = jax.block_until_ready(
        agent_model_forward(grid_in, directions, params))
    ref_bf16 = reference_forward(grid_in, directions, params, jnp.bfloat16)
    assert jnp.allclose(out_bf16, ref_bf16, atol=2e-3, rtol=2e-3), "bf16 mismatch"
    assert jnp.allclose(out_bf16, ref_f32, atol=5e-2, rtol=5e-2), "bf16 vs f32 drift"

    # 3) Larger batch exercising multiple grid tiles + tail padding.
    key, kg2, kd2 = jax.random.split(key, 3)
    B2 = 300
    grid2 = jax.random.normal(kg2, (B2, C, H, W), jnp.float32)
    dirs2 = jax.random.normal(kd2, (B2, D_DIR), jnp.float32)
    out2 = jax.block_until_ready(
        agent_model_forward(grid2, dirs2, params, batch_tile=128))
    ref2 = reference_forward(grid2, dirs2, params, jnp.bfloat16)
    assert out2.shape == (B2, output_size), out2.shape
    assert jnp.allclose(out2, ref2, atol=2e-3, rtol=2e-3), "tiled-batch mismatch"

    print("KERNEL_OK")
</pallas_src>

<mosaic_0001>
module attributes {stable_mosaic.version = 11 : i64} {
  func.func @_mlp_kernel(%arg0: i32, %arg1: memref<8x64xf32, #tpu.memory_space<vmem>>, %arg2: memref<8x4xf32, #tpu.memory_space<vmem>>, %arg3: memref<64x32xf32, #tpu.memory_space<vmem>>, %arg4: memref<4x32xf32, #tpu.memory_space<vmem>>, %arg5: memref<1x32xf32, #tpu.memory_space<vmem>>, %arg6: memref<32x32xf32, #tpu.memory_space<vmem>>, %arg7: memref<1x32xf32, #tpu.memory_space<vmem>>, %arg8: memref<32x128xf32, #tpu.memory_space<vmem>>, %arg9: memref<1x128xf32, #tpu.memory_space<vmem>>, %arg10: memref<8x128xf32, #tpu.memory_space<vmem>>) attributes {dimension_semantics = [#tpu.dimension_semantics<parallel>], iteration_bounds = array<i64: 1>, scalar_prefetch = 0 : i64, scratch_operands = 0 : i64, tpu.core_type = #tpu.core_type<tc>, window_params = [{transform_indices = @transform_0, window_bounds = array<i64: 8, 64>}, {transform_indices = @transform_1, window_bounds = array<i64: 8, 4>}, {pipeline_mode = #tpu.pipeline_mode<synchronous>, transform_indices = @transform_2, window_bounds = array<i64: 64, 32>}, {pipeline_mode = #tpu.pipeline_mode<synchronous>, transform_indices = @transform_3, window_bounds = array<i64: 4, 32>}, {pipeline_mode = #tpu.pipeline_mode<synchronous>, transform_indices = @transform_4, window_bounds = array<i64: 1, 32>}, {pipeline_mode = #tpu.pipeline_mode<synchronous>, transform_indices = @transform_5, window_bounds = array<i64: 32, 32>}, {pipeline_mode = #tpu.pipeline_mode<synchronous>, transform_indices = @transform_6, window_bounds = array<i64: 1, 32>}, {pipeline_mode = #tpu.pipeline_mode<synchronous>, transform_indices = @transform_7, window_bounds = array<i64: 32, 128>}, {pipeline_mode = #tpu.pipeline_mode<synchronous>, transform_indices = @transform_8, window_bounds = array<i64: 1, 128>}, {transform_indices = @transform_9, window_bounds = array<i64: 8, 128>}]} {
    %c0 = arith.constant 0 : index
    %c0_0 = arith.constant 0 : index
    %0 = vector.load %arg1[%c0, %c0_0] : memref<8x64xf32, #tpu.memory_space<vmem>>, vector<8x64xf32>
    %c0_1 = arith.constant 0 : index
    %c0_2 = arith.constant 0 : index
    %1 = vector.load %arg2[%c0_1, %c0_2] : memref<8x4xf32, #tpu.memory_space<vmem>>, vector<8x4xf32>
    %c0_3 = arith.constant 0 : index
    %c0_4 = arith.constant 0 : index
    %2 = vector.load %arg3[%c0_3, %c0_4] : memref<64x32xf32, #tpu.memory_space<vmem>>, vector<64x32xf32>
    %cst = arith.constant dense<0.000000e+00> : vector<8x32xf32>
    %3 = tpu.matmul %0, %2, %cst {dimension_numbers = #tpu.dot_dimension_numbers<[1], [0], [0], [1], [0, 0, 1, 1], [], []>} : vector<8x64xf32>, vector<64x32xf32>, vector<8x32xf32> -> vector<8x32xf32>
    %c0_5 = arith.constant 0 : index
    %c0_6 = arith.constant 0 : index
    %4 = vector.load %arg4[%c0_5, %c0_6] : memref<4x32xf32, #tpu.memory_space<vmem>>, vector<4x32xf32>
    %cst_7 = arith.constant dense<0.000000e+00> : vector<8x32xf32>
    %5 = tpu.matmul %1, %4, %cst_7 {dimension_numbers = #tpu.dot_dimension_numbers<[1], [0], [0], [1], [0, 0, 1, 1], [], []>} : vector<8x4xf32>, vector<4x32xf32>, vector<8x32xf32> -> vector<8x32xf32>
    %6 = arith.addf %3, %5 : vector<8x32xf32>
    %c0_8 = arith.constant 0 : index
    %c0_9 = arith.constant 0 : index
    %7 = vector.load %arg5[%c0_8, %c0_9] : memref<1x32xf32, #tpu.memory_space<vmem>>, vector<1x32xf32>
    %8 = vector.broadcast %7 : vector<1x32xf32> to vector<8x32xf32>
    %9 = arith.addf %6, %8 : vector<8x32xf32>
    %cst_10 = arith.constant 0.000000e+00 : f32
    %10 = vector.broadcast %cst_10 : f32 to vector<8x32xf32>
    %11 = arith.cmpf ogt, %9, %10 : vector<8x32xf32>
    %cst_11 = arith.constant 0.00999999977 : f32
    %12 = vector.broadcast %cst_11 : f32 to vector<8x32xf32>
    %13 = arith.mulf %12, %9 : vector<8x32xf32>
    %14 = arith.select %11, %9, %13 : vector<8x32xi1>, vector<8x32xf32>
    %c0_12 = arith.constant 0 : index
    %c0_13 = arith.constant 0 : index
    %15 = vector.load %arg6[%c0_12, %c0_13] : memref<32x32xf32, #tpu.memory_space<vmem>>, vector<32x32xf32>
    %cst_14 = arith.constant dense<0.000000e+00> : vector<8x32xf32>
    %16 = tpu.matmul %14, %15, %cst_14 {dimension_numbers = #tpu.dot_dimension_numbers<[1], [0], [0], [1], [0, 0, 1, 1], [], []>} : vector<8x32xf32>, vector<32x32xf32>, vector<8x32xf32> -> vector<8x32xf32>
    %c0_15 = arith.constant 0 : index
    %c0_16 = arith.constant 0 : index
    %17 = vector.load %arg7[%c0_15, %c0_16] : memref<1x32xf32, #tpu.memory_space<vmem>>, vector<1x32xf32>
    %18 = vector.broadcast %17 : vector<1x32xf32> to vector<8x32xf32>
    %19 = arith.addf %16, %18 : vector<8x32xf32>
    %cst_17 = arith.constant 0.000000e+00 : f32
    %20 = vector.broadcast %cst_17 : f32 to vector<8x32xf32>
    %21 = arith.cmpf ogt, %19, %20 : vector<8x32xf32>
    %cst_18 = arith.constant 0.00999999977 : f32
    %22 = vector.broadcast %cst_18 : f32 to vector<8x32xf32>
    %23 = arith.mulf %22, %19 : vector<8x32xf32>
    %24 = arith.select %21, %19, %23 : vector<8x32xi1>, vector<8x32xf32>
    %c0_19 = arith.constant 0 : index
    %c0_20 = arith.constant 0 : index
    %25 = vector.load %arg8[%c0_19, %c0_20] : memref<32x128xf32, #tpu.memory_space<vmem>>, vector<32x128xf32>
    %cst_21 = arith.constant dense<0.000000e+00> : vector<8x128xf32>
    %26 = tpu.matmul %24, %25, %cst_21 {dimension_numbers = #tpu.dot_dimension_numbers<[1], [0], [0], [1], [0, 0, 1, 1], [], []>} : vector<8x32xf32>, vector<32x128xf32>, vector<8x128xf32> -> vector<8x128xf32>
    %c0_22 = arith.constant 0 : index
    %c0_23 = arith.constant 0 : index
    %27 = vector.load %arg9[%c0_22, %c0_23] : memref<1x128xf32, #tpu.memory_space<vmem>>, vector<1x128xf32>
    %28 = vector.broadcast %27 : vector<1x128xf32> to vector<8x128xf32>
    %29 = arith.addf %26, %28 : vector<8x128xf32>
    %c0_24 = arith.constant 0 : index
    %c0_25 = arith.constant 0 : index
    %30 = vector.load %arg10[%c0_24, %c0_25] : memref<8x128xf32, #tpu.memory_space<vmem>>, vector<8x128xf32>
    tpu.vector_store %arg10[%c0_24, %c0_25], %29 {strides = array<i32>} : memref<8x128xf32, #tpu.memory_space<vmem>>, vector<8x128xf32>,
    return
  }
  func.func @transform_0(%arg0: i32) -> (i32, i32) {
    %c0_i32 = arith.constant 0 : i32
    %c0_i32_0 = arith.constant 0 : i32
    return %arg0, %c0_i32 : i32, i32
  }
  func.func @transform_1(%arg0: i32) -> (i32, i32) {
    %c0_i32 = arith.constant 0 : i32
    %c0_i32_0 = arith.constant 0 : i32
    return %arg0, %c0_i32 : i32, i32
  }
  func.func @transform_2(%arg0: i32) -> (i32, i32) {
    %c0_i32 = arith.constant 0 : i32
    %c0_i32_0 = arith.constant 0 : i32
    %c0_i32_1 = arith.constant 0 : i32
    return %c0_i32, %c0_i32_0 : i32, i32
  }
  func.func @transform_3(%arg0: i32) -> (i32, i32) {
    %c0_i32 = arith.constant 0 : i32
    %c0_i32_0 = arith.constant 0 : i32
    %c0_i32_1 = arith.constant 0 : i32
    return %c0_i32, %c0_i32_0 : i32, i32
  }
  func.func @transform_4(%arg0: i32) -> (i32, i32) {
    %c0_i32 = arith.constant 0 : i32
    %c0_i32_0 = arith.constant 0 : i32
    %c0_i32_1 = arith.constant 0 : i32
    return %c0_i32, %c0_i32_0 : i32, i32
  }
  func.func @transform_5(%arg0: i32) -> (i32, i32) {
    %c0_i32 = arith.constant 0 : i32
    %c0_i32_0 = arith.constant 0 : i32
    %c0_i32_1 = arith.constant 0 : i32
    return %c0_i32, %c0_i32_0 : i32, i32
  }
  func.func @transform_6(%arg0: i32) -> (i32, i32) {
    %c0_i32 = arith.constant 0 : i32
    %c0_i32_0 = arith.constant 0 : i32
    %c0_i32_1 = arith.constant 0 : i32
    return %c0_i32, %c0_i32_0 : i32, i32
  }
  func.func @transform_7(%arg0: i32) -> (i32, i32) {
    %c0_i32 = arith.constant 0 : i32
    %c0_i32_0 = arith.constant 0 : i32
    %c0_i32_1 = arith.constant 0 : i32
    return %c0_i32, %c0_i32_0 : i32, i32
  }
  func.func @transform_8(%arg0: i32) -> (i32, i32) {
    %c0_i32 = arith.constant 0 : i32
    %c0_i32_0 = arith.constant 0 : i32
    %c0_i32_1 = arith.constant 0 : i32
    return %c0_i32, %c0_i32_0 : i32, i32
  }
  func.func @transform_9(%arg0: i32) -> (i32, i32) {
    %c0_i32 = arith.constant 0 : i32
    %c0_i32_0 = arith.constant 0 : i32
    return %arg0, %c0_i32 : i32, i32
  }
}

</mosaic_0001>

<llo_original>
// kernel: tpu_custom_call.1
$region0: #{tpu_custom_call.1}
  #allocation0 [shape = 'u32[]', space=smem, size = 0x4, offset = 0x4, fixed_abs, tag = 'smem constant byte address 0x4 - core index']
  #allocation1 [shape = 'u32[144,128]{1,0:T(1,128)}', space=vmem, size = 0x12000, scoped, tag = 'internal scratch']
  %s0 = inlined_call_operand.vmem [shape: f32[8,64], index: 0, kind: input, shape index: {}]
  %s1 = inlined_call_operand.vmem [shape: f32[8,4], index: 1, kind: input, shape index: {}]
  %s2 = inlined_call_operand.vmem [shape: f32[64,32], index: 2, kind: input, shape index: {}]
  %s3 = inlined_call_operand.vmem [shape: f32[4,32], index: 3, kind: input, shape index: {}]
  %s4 = inlined_call_operand.vmem [shape: f32[1,32], index: 4, kind: input, shape index: {}]
  %s5 = inlined_call_operand.vmem [shape: f32[32,32], index: 5, kind: input, shape index: {}]
  %s6 = inlined_call_operand.vmem [shape: f32[1,32], index: 6, kind: input, shape index: {}]
  %s7 = inlined_call_operand.vmem [shape: f32[32,128], index: 7, kind: input, shape index: {}]
  %s8 = inlined_call_operand.vmem [shape: f32[1,128], index: 8, kind: input, shape index: {}]
  %s9 = inlined_call_operand.hbm [shape: f32[8,128], index: 9, kind: output, shape index: {}]
  %s10 = sld [smem:[#allocation0]]
  $region46: #{tpu_custom_call.1} parent=0
    _
  %s12 = ssub.s32 1, %s10
  %s13 = scalar_select 0, %s12, %s10
  $region1: #{tpu_custom_call.1} parent=0
    #allocation2 [shape = 'u8[4096]{0}', space=vmem, size = 0x1000, scoped, tag = 'output window, operand 0, single buffered']
    #allocation3 [shape = 's32[1]{0}', space=sflag, size = 0x4, scoped, tag = 'scoped memory for tpu_custom_call.1']
    %14 = vsyncpa [#allocation3], 0
    // Predicated region
    $region2: #{tpu_custom_call.1} parent=1 // pred_check
      _
    $region3: #{tpu_custom_call.1} parent=1 // pred_check_branch
      %16 = sbr.rel (0) target = $region5
    $region4: #{tpu_custom_call.1} parent=1 // pred_region
      _
    $region5: #{tpu_custom_call.1} parent=1 // pred_fallthru
      _
    // Predicated region
    $region6: #{tpu_custom_call.1} parent=1 // pred_check
      _
    $region7: #{tpu_custom_call.1} parent=1 // pred_check_branch
      %18 = sbr.rel (0) target = $region9
    $region8: #{tpu_custom_call.1} parent=1 // pred_region
      _
    $region9: #{tpu_custom_call.1} parent=1 // pred_fallthru
      _
    // Predicated region
    $region10: #{tpu_custom_call.1} parent=1 // pred_check
      _
    $region11: #{tpu_custom_call.1} parent=1 // pred_check_branch
      %20 = sbr.rel (0) target = $region13
    $region12: #{tpu_custom_call.1} parent=1 // pred_region
      _
    $region13: #{tpu_custom_call.1} parent=1 // pred_fallthru
      _
    // Predicated region
    $region14: #{tpu_custom_call.1} parent=1 // pred_check
      _
    $region15: #{tpu_custom_call.1} parent=1 // pred_check_branch
      %22 = sbr.rel (0) target = $region17
    $region16: #{tpu_custom_call.1} parent=1 // pred_region
      _
    $region17: #{tpu_custom_call.1} parent=1 // pred_fallthru
      _
    // Predicated region
    $region18: #{tpu_custom_call.1} parent=1 // pred_check
      _
    $region19: #{tpu_custom_call.1} parent=1 // pred_check_branch
      %24 = sbr.rel (0) target = $region21
    $region20: #{tpu_custom_call.1} parent=1 // pred_region
      _
    $region21: #{tpu_custom_call.1} parent=1 // pred_fallthru
      _
    // Predicated region
    $region22: #{tpu_custom_call.1} parent=1 // pred_check
      _
    $region23: #{tpu_custom_call.1} parent=1 // pred_check_branch
      %26 = sbr.rel (0) target = $region25
    $region24: #{tpu_custom_call.1} parent=1 // pred_region
      _
    $region25: #{tpu_custom_call.1} parent=1 // pred_fallthru
      _
    // Predicated region
    $region26: #{tpu_custom_call.1} parent=1 // pred_check
      _
    $region27: #{tpu_custom_call.1} parent=1 // pred_check_branch
      %28 = sbr.rel (0) target = $region29
    $region28: #{tpu_custom_call.1} parent=1 // pred_region
      _
    $region29: #{tpu_custom_call.1} parent=1 // pred_fallthru
      _
    // Predicated region
    $region30: #{tpu_custom_call.1} parent=1 // pred_check
      _
    $region31: #{tpu_custom_call.1} parent=1 // pred_check_branch
      %30 = sbr.rel (0) target = $region33
    $region32: #{tpu_custom_call.1} parent=1 // pred_region
      _
    $region33: #{tpu_custom_call.1} parent=1 // pred_fallthru
      _
    // Predicated region
    $region34: #{tpu_custom_call.1} parent=1 // pred_check
      _
    $region35: #{tpu_custom_call.1} parent=1 // pred_check_branch
      %32 = sbr.rel (0) target = $region37
    $region36: #{tpu_custom_call.1} parent=1 // pred_region
      _
    $region37: #{tpu_custom_call.1} parent=1 // pred_fallthru
      _
    %v33 = vld [vmem:[%s0] sm:$0xff]
    %v34 = vld [vmem:[%s1] sm:$0xff]
    %v35 = vld [vmem:[%s2] sm:$0xff]
    %v36 = vld [vmem:[%s2 + $0x8] sm:$0xff]
    %v37 = vld [vmem:[%s2 + $0x10] sm:$0xff]
    %v38 = vld [vmem:[%s2 + $0x18] sm:$0xff]
    %v39 = vld [vmem:[%s2 + $0x20] sm:$0xff]
    %v40 = vld [vmem:[%s2 + $0x28] sm:$0xff]
    %v41 = vld [vmem:[%s2 + $0x30] sm:$0xff]
    %v42 = vld [vmem:[%s2 + $0x38] sm:$0xff]
    %v43 = vld [vmem:[%s3] sm:$0xf]
    %vm44 = vcmask 31744
    %v46 = vsel %vm44, %v34, 0
    %vm48 = vcmask 1043456
    %v50 = vsel %vm48, %v43, 0
    %52 = vmatprep.subr.mxu0 0.0
    %53 = vmatpush1.msra.mxu0 %v50
    %54 = vmatprep.subr.mxu0 0.0
    %55 = vmatpush1.msra.mxu0 0.0
    %56 = vmatprep.subr.mxu0 0.0
    %57 = vmatpush1.msra.mxu0 0.0
    %58 = vmatprep.subr.mxu0 0.0
    %59 = vmatpush1.msra.mxu0 0.0
    %60 = vmatprep.subr.mxu0 0.0
    %61 = vmatpush1.msra.mxu0 0.0
    %62 = vmatprep.subr.mxu0 0.0
    %63 = vmatpush1.msra.mxu0 0.0
    %64 = vmatprep.subr.mxu0 0.0
    %65 = vmatpush1.msra.mxu0 0.0
    %66 = vmatprep.subr.mxu0 0.0
    %67 = vmatpush1.msra.mxu0 0.0
    %68 = vmatprep.subr.mxu0 0.0
    %69 = vmatpush1.msra.mxu0 0.0
    %70 = vmatprep.subr.mxu0 0.0
    %71 = vmatpush1.msra.mxu0 0.0
    %72 = vmatprep.subr.mxu0 0.0
    %73 = vmatpush1.msra.mxu0 0.0
    %74 = vmatprep.subr.mxu0 0.0
    %75 = vmatpush1.msra.mxu0 0.0
    %76 = vmatprep.subr.mxu0 0.0
    %77 = vmatpush1.msra.mxu0 0.0
    %78 = vmatprep.subr.mxu0 0.0
    %79 = vmatpush1.msra.mxu0 0.0
    %80 = vmatprep.subr.mxu0 0.0
    %81 = vmatpush1.msra.mxu0 0.0
    %82 = vmatprep.subr.mxu0 0.0
    %83 = vmatpush1.msra.mxu0 0.0
    %84 = vmatprep.subr.mxu0 0.0
    %85 = vmatpush1.msra.mxu0 0.0
    %86 = vmatprep.subr.mxu0 0.0
    %87 = vmatpush1.msra.mxu0 0.0
    %88 = vmatprep.subr.mxu0 0.0
    %89 = vmatpush1.msra.mxu0 0.0
    %90 = vmatprep.subr.mxu0 0.0
    %91 = vmatpush1.msra.mxu0 0.0
    %92 = vmatprep.subr.mxu0 0.0
    %93 = vmatpush1.msra.mxu0 0.0
    %94 = vmatprep.subr.mxu0 0.0
    %95 = vmatpush1.msra.mxu0 0.0
    %96 = vmatprep.subr.mxu0 0.0
    %97 = vmatpush1.msra.mxu0 0.0
    %98 = vmatprep.subr.mxu0 0.0
    %99 = vmatpush1.msra.mxu0 0.0
    %100 = vmatprep.subr.mxu0 0.0
    %101 = vmatpush1.msra.mxu0 0.0
    %102 = vmatprep.subr.mxu0 0.0
    %103 = vmatpush1.msra.mxu0 0.0
    %104 = vmatprep.subr.mxu0 0.0
    %105 = vmatpush1.msra.mxu0 0.0
    %106 = vmatprep.subr.mxu0 0.0
    %107 = vmatpush1.msra.mxu0 0.0
    %108 = vmatprep.subr.mxu0 0.0
    %109 = vmatpush1.msra.mxu0 0.0
    %110 = vmatprep.subr.mxu0 0.0
    %111 = vmatpush1.msra.mxu0 0.0
    %112 = vmatprep.subr.mxu0 0.0
    %113 = vmatpush1.msra.mxu0 0.0
    %114 = vmatprep.subr.mxu0 0.0
    %115 = vmatpush1.msra.mxu0 0.0
    %116 = vmatprep.mubr.f32.mxu0 0.0
    %117 = vmatmul.mubr.f32.gmra.mrb[0].mxu0 %v46
    %v118 = vpop.f32.mrb[0].mxu0
    %v119 = vadd.f32 0.0, %v118
    %v120 = vpop.f32.mrb[0].mxu0
    %121 = vdwg.mxu0
    %vm122 = vcmask 523264
    %v124 = vsel %vm122, %v33, 0
    %126 = vmatprep.subr.mxu0 0.0
    %127 = vmatpush1.msra.mxu0 %v35
    %128 = vmatprep.subr.mxu0 0.0
    %129 = vmatpush1.msra.mxu0 %v36
    %130 = vmatprep.subr.mxu0 0.0
    %131 = vmatpush1.msra.mxu0 %v37
    %132 = vmatprep.subr.mxu0 0.0
    %133 = vmatpush1.msra.mxu0 %v38
    %134 = vmatprep.subr.mxu0 0.0
    %135 = vmatpush1.msra.mxu0 %v39
    %136 = vmatprep.subr.mxu0 0.0
    %137 = vmatpush1.msra.mxu0 %v40
    %138 = vmatprep.subr.mxu0 0.0
    %139 = vmatpush1.msra.mxu0 %v41
    %140 = vmatprep.subr.mxu0 0.0
    %141 = vmatpush1.msra.mxu0 %v42
    %142 = vmatprep.subr.mxu0 0.0
    %143 = vmatpush1.msra.mxu0 0.0
    %144 = vmatprep.subr.mxu0 0.0
    %145 = vmatpush1.msra.mxu0 0.0
    %146 = vmatprep.subr.mxu0 0.0
    %147 = vmatpush1.msra.mxu0 0.0
    %148 = vmatprep.subr.mxu0 0.0
    %149 = vmatpush1.msra.mxu0 0.0
    %150 = vmatprep.subr.mxu0 0.0
    %151 = vmatpush1.msra.mxu0 0.0
    %152 = vmatprep.subr.mxu0 0.0
    %153 = vmatpush1.msra.mxu0 0.0
    %154 = vmatprep.subr.mxu0 0.0
    %155 = vmatpush1.msra.mxu0 0.0
    %156 = vmatprep.subr.mxu0 0.0
    %157 = vmatpush1.msra.mxu0 0.0
    %158 = vmatprep.subr.mxu0 0.0
    %159 = vmatpush1.msra.mxu0 0.0
    %160 = vmatprep.subr.mxu0 0.0
    %161 = vmatpush1.msra.mxu0 0.0
    %162 = vmatprep.subr.mxu0 0.0
    %163 = vmatpush1.msra.mxu0 0.0
    %164 = vmatprep.subr.mxu0 0.0
    %165 = vmatpush1.msra.mxu0 0.0
    %166 = vmatprep.subr.mxu0 0.0
    %167 = vmatpush1.msra.mxu0 0.0
    %168 = vmatprep.subr.mxu0 0.0
    %169 = vmatpush1.msra.mxu0 0.0
    %170 = vmatprep.subr.mxu0 0.0
    %171 = vmatpush1.msra.mxu0 0.0
    %172 = vmatprep.subr.mxu0 0.0
    %173 = vmatpush1.msra.mxu0 0.0
    %174 = vmatprep.subr.mxu0 0.0
    %175 = vmatpush1.msra.mxu0 0.0
    %176 = vmatprep.subr.mxu0 0.0
    %177 = vmatpush1.msra.mxu0 0.0
    %178 = vmatprep.subr.mxu0 0.0
    %179 = vmatpush1.msra.mxu0 0.0
    %180 = vmatprep.subr.mxu0 0.0
    %181 = vmatpush1.msra.mxu0 0.0
    %182 = vmatprep.subr.mxu0 0.0
    %183 = vmatpush1.msra.mxu0 0.0
    %184 = vmatprep.subr.mxu0 0.0
    %185 = vmatpush1.msra.mxu0 0.0
    %186 = vmatprep.subr.mxu0 0.0
    %187 = vmatpush1.msra.mxu0 0.0
    %188 = vmatprep.subr.mxu0 0.0
    %189 = vmatpush1.msra.mxu0 0.0
    %190 = vmatprep.mubr.f32.mxu0 0.0
    %191 = vmatmul.mubr.f32.gmra.mrb[0].mxu0 %v124
    %v192 = vpop.f32.mrb[0].mxu0
    %v193 = vadd.f32 %v119, %v192
    %v194 = vpop.f32.mrb[0].mxu0
    %195 = vdwg.mxu0
    %v196 = vld [vmem:[%s4] sm:$0x1]
    %v198 = vlaneseq
    %v199 = vshrl.u32 %v198, 7
    %v200 = vsub.s32 0, %v199
    %v201 = vrot.slane %v196, %v200
    %v203 = vadd.f32 %v193, %v201
    %vm204 = vcmp.gt.f32.partialorder %v203, 0.0
    %v205 = vmul.f32 %v203, 0.01
    %v206 = vsel %vm204, %v203, %v205
    %v207 = vld [vmem:[%s5] sm:$0xff]
    %v208 = vld [vmem:[%s5 + $0x8] sm:$0xff]
    %v209 = vld [vmem:[%s5 + $0x10] sm:$0xff]
    %v210 = vld [vmem:[%s5 + $0x18] sm:$0xff]
    %v211 = vld [vmem:[%s6] sm:$0x1]
    %v213 = vlaneseq
    %v214 = vshrl.u32 %v213, 7
    %v215 = vsub.s32 0, %v214
    %v216 = vrot.slane %v211, %v215
    %vm218 = vcmask 261120
    %v220 = vsel %vm218, %v206, 0
    %222 = vmatprep.subr.mxu0 0.0
    %223 = vmatpush1.msra.mxu0 %v207
    %224 = vmatprep.subr.mxu0 0.0
    %225 = vmatpush1.msra.mxu0 %v208
    %226 = vmatprep.subr.mxu0 0.0
    %227 = vmatpush1.msra.mxu0 %v209
    %228 = vmatprep.subr.mxu0 0.0
    %229 = vmatpush1.msra.mxu0 %v210
    %230 = vmatprep.subr.mxu0 0.0
    %231 = vmatpush1.msra.mxu0 0.0
    %232 = vmatprep.subr.mxu0 0.0
    %233 = vmatpush1.msra.mxu0 0.0
    %234 = vmatprep.subr.mxu0 0.0
    %235 = vmatpush1.msra.mxu0 0.0
    %236 = vmatprep.subr.mxu0 0.0
    %237 = vmatpush1.msra.mxu0 0.0
    %238 = vmatprep.subr.mxu0 0.0
    %239 = vmatpush1.msra.mxu0 0.0
    %240 = vmatprep.subr.mxu0 0.0
    %241 = vmatpush1.msra.mxu0 0.0
    %242 = vmatprep.subr.mxu0 0.0
    %243 = vmatpush1.msra.mxu0 0.0
    %244 = vmatprep.subr.mxu0 0.0
    %245 = vmatpush1.msra.mxu0 0.0
    %246 = vmatprep.subr.mxu0 0.0
    %247 = vmatpush1.msra.mxu0 0.0
    %248 = vmatprep.subr.mxu0 0.0
    %249 = vmatpush1.msra.mxu0 0.0
    %250 = vmatprep.subr.mxu0 0.0
    %251 = vmatpush1.msra.mxu0 0.0
    %252 = vmatprep.subr.mxu0 0.0
    %253 = vmatpush1.msra.mxu0 0.0
    %254 = vmatprep.subr.mxu0 0.0
    %255 = vmatpush1.msra.mxu0 0.0
    %256 = vmatprep.subr.mxu0 0.0
    %257 = vmatpush1.msra.mxu0 0.0
    %258 = vmatprep.subr.mxu0 0.0
    %259 = vmatpush1.msra.mxu0 0.0
    %260 = vmatprep.subr.mxu0 0.0
    %261 = vmatpush1.msra.mxu0 0.0
    %262 = vmatprep.subr.mxu0 0.0
    %263 = vmatpush1.msra.mxu0 0.0
    %264 = vmatprep.subr.mxu0 0.0
    %265 = vmatpush1.msra.mxu0 0.0
    %266 = vmatprep.subr.mxu0 0.0
    %267 = vmatpush1.msra.mxu0 0.0
    %268 = vmatprep.subr.mxu0 0.0
    %269 = vmatpush1.msra.mxu0 0.0
    %270 = vmatprep.subr.mxu0 0.0
    %271 = vmatpush1.msra.mxu0 0.0
    %272 = vmatprep.subr.mxu0 0.0
    %273 = vmatpush1.msra.mxu0 0.0
    %274 = vmatprep.subr.mxu0 0.0
    %275 = vmatpush1.msra.mxu0 0.0
    %276 = vmatprep.subr.mxu0 0.0
    %277 = vmatpush1.msra.mxu0 0.0
    %278 = vmatprep.subr.mxu0 0.0
    %279 = vmatpush1.msra.mxu0 0.0
    %280 = vmatprep.subr.mxu0 0.0
    %281 = vmatpush1.msra.mxu0 0.0
    %282 = vmatprep.subr.mxu0 0.0
    %283 = vmatpush1.msra.mxu0 0.0
    %284 = vmatprep.subr.mxu0 0.0
    %285 = vmatpush1.msra.mxu0 0.0
    %286 = vmatprep.mubr.f32.mxu0 0.0
    %287 = vmatmul.mubr.f32.gmra.mrb[0].mxu0 %v220
    %v288 = vpop.f32.mrb[0].mxu0
    %v289 = vadd.f32 %v216, %v288
    %v290 = vpop.f32.mrb[0].mxu0
    %291 = vdwg.mxu0
    %vm292 = vcmp.gt.f32.partialorder %v289, 0.0
    %v293 = vmul.f32 %v289, 0.01
    %v294 = vsel %vm292, %v289, %v293
    %v295 = vld [vmem:[%s7] sm:$0xff]
    %v296 = vld [vmem:[%s7 + $0x8] sm:$0xff]
    %v297 = vld [vmem:[%s7 + $0x10] sm:$0xff]
    %v298 = vld [vmem:[%s7 + $0x18] sm:$0xff]
    %v299 = vld [vmem:[%s8] sm:$0x1]
    %v301 = vlaneseq
    %v302 = vshrl.u32 %v301, 7
    %v303 = vsub.s32 0, %v302
    %v304 = vrot.slane %v299, %v303
    %v307 = vsel %vm218, %v294, 0
    %309 = vmatprep.subr.mxu0 0.0
    %310 = vmatpush1.msra.mxu0 %v295
    %311 = vmatprep.subr.mxu0 0.0
    %312 = vmatpush1.msra.mxu0 %v296
    %313 = vmatprep.subr.mxu0 0.0
    %314 = vmatpush1.msra.mxu0 %v297
    %315 = vmatprep.subr.mxu0 0.0
    %316 = vmatpush1.msra.mxu0 %v298
    %317 = vmatprep.subr.mxu0 0.0
    %318 = vmatpush1.msra.mxu0 0.0
    %319 = vmatprep.subr.mxu0 0.0
    %320 = vmatpush1.msra.mxu0 0.0
    %321 = vmatprep.subr.mxu0 0.0
    %322 = vmatpush1.msra.mxu0 0.0
    %323 = vmatprep.subr.mxu0 0.0
    %324 = vmatpush1.msra.mxu0 0.0
    %325 = vmatprep.subr.mxu0 0.0
    %326 = vmatpush1.msra.mxu0 0.0
    %327 = vmatprep.subr.mxu0 0.0
    %328 = vmatpush1.msra.mxu0 0.0
    %329 = vmatprep.subr.mxu0 0.0
    %330 = vmatpush1.msra.mxu0 0.0
    %331 = vmatprep.subr.mxu0 0.0
    %332 = vmatpush1.msra.mxu0 0.0
    %333 = vmatprep.subr.mxu0 0.0
    %334 = vmatpush1.msra.mxu0 0.0
    %335 = vmatprep.subr.mxu0 0.0
    %336 = vmatpush1.msra.mxu0 0.0
    %337 = vmatprep.subr.mxu0 0.0
    %338 = vmatpush1.msra.mxu0 0.0
    %339 = vmatprep.subr.mxu0 0.0
    %340 = vmatpush1.msra.mxu0 0.0
    %341 = vmatprep.subr.mxu0 0.0
    %342 = vmatpush1.msra.mxu0 0.0
    %343 = vmatprep.subr.mxu0 0.0
    %344 = vmatpush1.msra.mxu0 0.0
    %345 = vmatprep.subr.mxu0 0.0
    %346 = vmatpush1.msra.mxu0 0.0
    %347 = vmatprep.subr.mxu0 0.0
    %348 = vmatpush1.msra.mxu0 0.0
    %349 = vmatprep.subr.mxu0 0.0
    %350 = vmatpush1.msra.mxu0 0.0
    %351 = vmatprep.subr.mxu0 0.0
    %352 = vmatpush1.msra.mxu0 0.0
    %353 = vmatprep.subr.mxu0 0.0
    %354 = vmatpush1.msra.mxu0 0.0
    %355 = vmatprep.subr.mxu0 0.0
    %356 = vmatpush1.msra.mxu0 0.0
    %357 = vmatprep.subr.mxu0 0.0
    %358 = vmatpush1.msra.mxu0 0.0
    %359 = vmatprep.subr.mxu0 0.0
    %360 = vmatpush1.msra.mxu0 0.0
    %361 = vmatprep.subr.mxu0 0.0
    %362 = vmatpush1.msra.mxu0 0.0
    %363 = vmatprep.subr.mxu0 0.0
    %364 = vmatpush1.msra.mxu0 0.0
    %365 = vmatprep.subr.mxu0 0.0
    %366 = vmatpush1.msra.mxu0 0.0
    %367 = vmatprep.subr.mxu0 0.0
    %368 = vmatpush1.msra.mxu0 0.0
    %369 = vmatprep.subr.mxu0 0.0
    %370 = vmatpush1.msra.mxu0 0.0
    %371 = vmatprep.subr.mxu0 0.0
    %372 = vmatpush1.msra.mxu0 0.0
    %373 = vmatprep.mubr.f32.mxu0 0.0
    %374 = vmatmul.mubr.f32.gmra.mrb[0].mxu0 %v307
    %v375 = vpop.f32.mrb[0].mxu0
    %v376 = vadd.f32 %v304, %v375
    %v377 = vpop.f32.mrb[0].mxu0
    %378 = vdwg.mxu0
    %379 = vst [vmem:[#allocation2] sm:$0xff] %v376
    // Predicated region
    $region38: #{tpu_custom_call.1} parent=1 // pred_check
      _
    $region39: #{tpu_custom_call.1} parent=1 // pred_check_branch
      %381 = sbr.rel (0) target = $region41
    $region40: #{tpu_custom_call.1} parent=1 // pred_region
      %s383 = ssub.s32 128, 128
      %384 = vsyncadd [#allocation3], %s383
      %s386 = sshll.u32 [#allocation2], 4
      %s387 = int_to_ptr.vmem [resolvable:$true] %s386
      %389 = dma.vmem_to_hbm [thread:$0]  %s387, 128, %s9, [#allocation3]
    $region41: #{tpu_custom_call.1} parent=1 // pred_fallthru
      _
    // Predicated region
    $region42: #{tpu_custom_call.1} parent=1 // pred_check
      _
    $region43: #{tpu_custom_call.1} parent=1 // pred_check_branch
      %391 = sbr.rel (0) target = $region45
    $region44: #{tpu_custom_call.1} parent=1 // pred_region
      %392 = dma.done [#allocation3], 128
    $region45: #{tpu_custom_call.1} parent=1 // pred_fallthru
      _
    %393 = vsyncpa [#allocation3], 1

</llo_original>
